<compile_context>
chip_gen: v7x
topology: tpu7x:2x2x1
jax: 0.10.0
libtpu: 0.0.40
codegen_flags: <defaults>
</compile_context>

<pallas_src>
import jax
import jax.numpy as jnp
from jax.experimental import pallas as pl
from jax.experimental.pallas import tpu as pltpu


# ----------------------------------------------------------------------------
# Wrapper-side weight prep: fold BN scale plus the conv's W axis (taps, stride,
# zero padding) into a K-stacked block-Toeplitz matmul matrix (bf16):
#   R[kh*W_in*Cin + w*Cin + ci, j*Cout + c] =
#       w_hwio[kh, w - j*stride + pad, ci, c] * scale[c]   (0 if kw out of range)
# ----------------------------------------------------------------------------
def _toeplitz_weights(w_hwio, scale, *, w_in, stride, pad):
    kh_, kw_, cin, cout = w_hwio.shape
    w_out = (w_in + 2 * pad - kw_) // stride + 1
    ws = w_hwio.astype(jnp.float32) * scale.astype(jnp.float32)[None, None, None, :]
    r = jnp.zeros((kh_, w_in * cin, w_out * cout), jnp.float32)
    for kw in range(kw_):
        for j in range(w_out):
            w_idx = j * stride + kw - pad
            if 0 <= w_idx < w_in:
                r = r.at[:, w_idx * cin:(w_idx + 1) * cin,
                         j * cout:(j + 1) * cout].set(ws[:, kw])
    return r.reshape(kh_ * w_in * cin, w_out * cout).astype(jnp.bfloat16)


def _pick_batch_block(n, min_programs=2):
    """Largest Nb dividing N while keeping >= min_programs grid steps (v7x)."""
    if n <= min_programs:
        return 1 if n > 1 else max(n, 1)
    nb = n // min_programs
    while nb > 1 and n % nb != 0:
        nb -= 1
    return nb


# ----------------------------------------------------------------------------
# Fused residual-block kernel. All operands are flat (rows, lanes) slabs:
#   h   = relu(x_in @ R1_stacked + b1)          conv1 + BN1 + ReLU   (1 matmul)
#   y   = [h(i-1) | h(i) | h(i+1)] @ R2_stacked + b2   conv2 + BN2   (1 matmul)
#   sc  = x_sc @ Rsc + bsc  (projection)   |   x_sc  (identity)
#   out = relu(y + sc)
# ----------------------------------------------------------------------------
def _make_resblock_kernel(Nb, HO, WOC, has_projection):
    M = Nb * HO  # MXU M dimension (rows per program)

    def kernel(x_in_ref, x_sc_ref, r1_ref, r2_ref, *rest):
        if has_projection:
            rsc_ref, b1_ref, b2_ref, bsc_ref, o_ref = rest
        else:
            b1_ref, b2_ref, o_ref = rest

        # ---- conv1 + folded BN1 + ReLU : single K-stacked MXU matmul --------
        acc1 = jnp.dot(x_in_ref[...], r1_ref[...],
                       preferred_element_type=jnp.float32)
        h = jnp.maximum(acc1 + b1_ref[...], 0.0)          # (M, WOC) f32, vregs

        # ---- three H-shifted conv2 operands via XLU sublane rolls -----------
        # (mask rows that wrap across the image boundary -> zero H-padding)
        row = jax.lax.broadcasted_iota(jnp.int32, (M, WOC), 0) % HO
        h_up = jnp.where(row == 0, 0.0,
                         pltpu.roll(h, shift=1, axis=0))          # h[i-1]
        h_dn = jnp.where(row == HO - 1, 0.0,
                         pltpu.roll(h, shift=M - 1, axis=0))      # h[i+1]
        h_slab = jnp.concatenate([h_up, h, h_dn], axis=1).astype(jnp.bfloat16)

        # ---- conv2 + folded BN2 : single K-stacked MXU matmul ----------------
        acc2 = jnp.dot(h_slab, r2_ref[...],
                       preferred_element_type=jnp.float32) + b2_ref[...]

        # ---- shortcut --------------------------------------------------------
        if has_projection:
            sc = jnp.dot(x_sc_ref[...], rsc_ref[...],
                         preferred_element_type=jnp.float32) + bsc_ref[...]
        else:
            sc = x_sc_ref[...]                            # f32 identity path

        # ---- residual add + final ReLU (f32), lane-dense store ---------------
        o_ref[...] = jnp.maximum(acc2 + sc, 0.0).astype(o_ref.dtype)

    return kernel


# ----------------------------------------------------------------------------
# ResidualBlock forward: NCHW in -> NCHW out (PyTorch layout at the boundary).
# ----------------------------------------------------------------------------
def residual_block_forward(x_nchw, params, stride):
    N, Cin, H, W = x_nchw.shape
    K = params["w1"].shape[0]                    # 3
    pad = (K - 1) // 2
    Cout = params["w1"].shape[-1]
    HO = (H + 2 * pad - K) // stride + 1
    WO = (W + 2 * pad - K) // stride + 1
    WOC = WO * Cout
    WCin = W * Cin
    has_projection = "w_sc" in params

    Nb = _pick_batch_block(N)
    MR = Nb * HO                                 # rows per program

    x = jnp.transpose(x_nchw, (0, 2, 3, 1))      # NHWC, f32

    # ---- activation prep (plain XLA): H-pad once, stack the K H-taps so the
    #      kernel does one K-stacked matmul per conv; bf16-cast MXU operands
    #      here (halves their HBM->VMEM DMA bytes).
    xp = jnp.pad(x, ((0, 0), (pad, pad), (0, 0), (0, 0))).reshape(N, H + 2 * pad, WCin)
    taps = [xp[:, kh:kh + (HO - 1) * stride + 1:stride, :] for kh in range(K)]
    x_in = (jnp.concatenate(taps, axis=-1)
            .reshape(N * HO, K * WCin).astype(jnp.bfloat16))

    if has_projection:
        x_sc = (x[:, 0:(HO - 1) * stride + 1:stride]
                .reshape(N * HO, WCin).astype(jnp.bfloat16))  # bf16 MXU operand
        sc_lanes = WCin
    else:
        x_sc = x.reshape(N * HO, WOC)                         # f32 residual term
        sc_lanes = WOC

    # ---- weight prep: BN-folded, K-stacked block-Toeplitz matrices + biases --
    r1 = _toeplitz_weights(params["w1"], params["bn1_scale"],
                           w_in=W, stride=stride, pad=pad)    # (K*WCin, WOC)
    r2 = _toeplitz_weights(params["w2"], params["bn2_scale"],
                           w_in=WO, stride=1, pad=pad)        # (K*WOC, WOC)
    b1 = jnp.tile(params["bn1_bias"].astype(jnp.float32), WO).reshape(1, WOC)
    b2 = jnp.tile(params["bn2_bias"].astype(jnp.float32), WO).reshape(1, WOC)

    in_specs = [
        pl.BlockSpec((MR, K * WCin), lambda n: (n, 0)),
        pl.BlockSpec((MR, sc_lanes), lambda n: (n, 0)),
        pl.BlockSpec(r1.shape, lambda n: (0, 0)),
        pl.BlockSpec(r2.shape, lambda n: (0, 0)),
    ]
    args = [x_in, x_sc, r1, r2]
    if has_projection:
        rsc = _toeplitz_weights(params["w_sc"], params["bn_sc_scale"],
                                w_in=W, stride=stride, pad=0)  # (WCin, WOC)
        bsc = jnp.tile(params["bn_sc_bias"].astype(jnp.float32), WO).reshape(1, WOC)
        in_specs.append(pl.BlockSpec(rsc.shape, lambda n: (0, 0)))
        args.append(rsc)
    in_specs += [pl.BlockSpec((1, WOC), lambda n: (0, 0)),
                 pl.BlockSpec((1, WOC), lambda n: (0, 0))]
    args += [b1, b2]
    if has_projection:
        in_specs.append(pl.BlockSpec((1, WOC), lambda n: (0, 0)))
        args.append(bsc)

    kernel = _make_resblock_kernel(Nb, HO, WOC, has_projection)

    out = pl.pallas_call(
        kernel,
        out_shape=jax.ShapeDtypeStruct((N * HO, WOC), jnp.float32),
        grid=(N // Nb,),
        in_specs=in_specs,
        out_specs=pl.BlockSpec((MR, WOC), lambda n: (n, 0)),
        compiler_params=pltpu.CompilerParams(
            dimension_semantics=("parallel",)),
    )(*args)

    out = out.reshape(N, HO, WO, Cout)
    return jnp.transpose(out, (0, 3, 1, 2))      # back to NCHW (f32, module parity)


# ----------------------------------------------------------------------------
# Deterministic parameters (PyTorch OIHW -> HWIO, inference-mode folded BN).
# ----------------------------------------------------------------------------
def make_params(key, in_channels, out_channels, stride, eps=1e-5):
    k1, k2, k3 = jax.random.split(key, 3)

    def conv_w(k, cout, cin, ksize):
        w = jax.random.normal(k, (cout, cin, ksize, ksize), jnp.float32)
        w = w * (1.0 / jnp.sqrt(cin * ksize * ksize))
        return jnp.transpose(w, (2, 3, 1, 0))            # OIHW -> HWIO

    def folded_bn(c, shift):
        gamma = 1.0 + 0.1 * jnp.arange(c, dtype=jnp.float32)
        beta = 0.05 * jnp.arange(c, dtype=jnp.float32) - shift
        running_mean = 0.01 * jnp.arange(c, dtype=jnp.float32)
        running_var = 1.0 + 0.05 * jnp.arange(c, dtype=jnp.float32)
        scale = gamma * jax.lax.rsqrt(running_var + eps)
        bias = beta - running_mean * scale
        return scale, bias

    s1, b1 = folded_bn(out_channels, 0.10)
    s2, b2 = folded_bn(out_channels, 0.05)
    params = {
        "w1": conv_w(k1, out_channels, in_channels, 3),
        "bn1_scale": s1, "bn1_bias": b1,
        "w2": conv_w(k2, out_channels, out_channels, 3),
        "bn2_scale": s2, "bn2_bias": b2,
    }
    if stride != 1 or in_channels != out_channels:
        ss, bs = folded_bn(out_channels, 0.02)
        params["w_sc"] = conv_w(k3, out_channels, in_channels, 1)
        params["bn_sc_scale"] = ss
        params["bn_sc_bias"] = bs
    return params


# ----------------------------------------------------------------------------
# Pure-JAX reference (same math, NCHW boundary) to sanity-check the kernel.
# ----------------------------------------------------------------------------
def residual_block_reference(x_nchw, params, stride):
    x = jnp.transpose(x_nchw, (0, 2, 3, 1))

    def conv(v, w, s, pad):
        return jax.lax.conv_general_dilated(
            v, w, window_strides=(s, s), padding=((pad, pad), (pad, pad)),
            dimension_numbers=("NHWC", "HWIO", "NHWC"),
            precision=jax.lax.Precision.HIGHEST)

    h = conv(x, params["w1"], stride, 1) * params["bn1_scale"] + params["bn1_bias"]
    h = jnp.maximum(h, 0.0)
    h = conv(h, params["w2"], 1, 1) * params["bn2_scale"] + params["bn2_bias"]
    if "w_sc" in params:
        sc = conv(x, params["w_sc"], stride, 0) * params["bn_sc_scale"] + params["bn_sc_bias"]
    else:
        sc = x
    out = jnp.maximum(h + sc, 0.0)
    return jnp.transpose(out, (0, 3, 1, 2))


if __name__ == "__main__":
    root = jax.random.PRNGKey(0)
    N, H, W = 4, 16, 16        # N=4 -> Nb=2 batch block, grid of 2 programs
    configs = [
        (4, 8, 1),   # channel change -> projection (1x1 conv + BN) shortcut
        (8, 8, 1),   # same channels  -> identity shortcut
        (4, 8, 2),   # strided block  -> strided projection shortcut
    ]
    for i, (cin, cout, stride) in enumerate(configs):
        kx, kp = jax.random.split(jax.random.fold_in(root, i))
        x = jax.random.normal(kx, (N, cin, H, W), jnp.float32)   # NCHW
        params = make_params(kp, cin, cout, stride)

        fwd = jax.jit(residual_block_forward, static_argnums=2)
        out = fwd(x, params, stride)
        jax.block_until_ready(out)

        HO = (H + 2 - 3) // stride + 1
        assert out.shape == (N, cout, HO, HO), out.shape

        ref = residual_block_reference(x, params, stride)
        max_err = float(jnp.max(jnp.abs(out - ref)))
        # bf16 MXU operands (per perf guidance) -> slightly looser tolerance.
        if not jnp.allclose(out, ref, atol=3e-2, rtol=3e-2):
            raise AssertionError(
                f"config (cin={cin}, cout={cout}, stride={stride}): "
                f"mismatch vs reference, max_abs_err={max_err}")

    print("KERNEL_OK")
</pallas_src>

<mosaic_0001>
module attributes {stable_mosaic.version = 11 : i64} {
  func.func @kernel(%arg0: i32, %arg1: memref<32x192xbf16, #tpu.memory_space<vmem>>, %arg2: memref<32x64xbf16, #tpu.memory_space<vmem>>, %arg3: memref<192x128xbf16, #tpu.memory_space<vmem>>, %arg4: memref<384x128xbf16, #tpu.memory_space<vmem>>, %arg5: memref<64x128xbf16, #tpu.memory_space<vmem>>, %arg6: memref<1x128xf32, #tpu.memory_space<vmem>>, %arg7: memref<1x128xf32, #tpu.memory_space<vmem>>, %arg8: memref<1x128xf32, #tpu.memory_space<vmem>>, %arg9: memref<32x128xf32, #tpu.memory_space<vmem>>) attributes {dimension_semantics = [#tpu.dimension_semantics<parallel>], iteration_bounds = array<i64: 2>, scalar_prefetch = 0 : i64, scratch_operands = 0 : i64, tpu.core_type = #tpu.core_type<tc>, window_params = [{transform_indices = @transform_0, window_bounds = array<i64: 32, 192>}, {transform_indices = @transform_1, window_bounds = array<i64: 32, 64>}, {pipeline_mode = #tpu.pipeline_mode<synchronous>, transform_indices = @transform_2, window_bounds = array<i64: 192, 128>}, {pipeline_mode = #tpu.pipeline_mode<synchronous>, transform_indices = @transform_3, window_bounds = array<i64: 384, 128>}, {pipeline_mode = #tpu.pipeline_mode<synchronous>, transform_indices = @transform_4, window_bounds = array<i64: 64, 128>}, {pipeline_mode = #tpu.pipeline_mode<synchronous>, transform_indices = @transform_5, window_bounds = array<i64: 1, 128>}, {pipeline_mode = #tpu.pipeline_mode<synchronous>, transform_indices = @transform_6, window_bounds = array<i64: 1, 128>}, {pipeline_mode = #tpu.pipeline_mode<synchronous>, transform_indices = @transform_7, window_bounds = array<i64: 1, 128>}, {transform_indices = @transform_8, window_bounds = array<i64: 32, 128>}]} {
    %c0 = arith.constant 0 : index
    %c0_0 = arith.constant 0 : index
    %0 = vector.load %arg1[%c0, %c0_0] : memref<32x192xbf16, #tpu.memory_space<vmem>>, vector<32x192xbf16>
    %c0_1 = arith.constant 0 : index
    %c0_2 = arith.constant 0 : index
    %1 = vector.load %arg3[%c0_1, %c0_2] : memref<192x128xbf16, #tpu.memory_space<vmem>>, vector<192x128xbf16>
    %cst = arith.constant dense<0.000000e+00> : vector<32x128xf32>
    %2 = tpu.matmul %0, %1, %cst {dimension_numbers = #tpu.dot_dimension_numbers<[1], [0], [0], [1], [0, 0, 1, 1], [], []>} : vector<32x192xbf16>, vector<192x128xbf16>, vector<32x128xf32> -> vector<32x128xf32>
    %c0_3 = arith.constant 0 : index
    %c0_4 = arith.constant 0 : index
    %3 = vector.load %arg6[%c0_3, %c0_4] : memref<1x128xf32, #tpu.memory_space<vmem>>, vector<1x128xf32>
    %4 = vector.broadcast %3 : vector<1x128xf32> to vector<32x128xf32>
    %5 = arith.addf %2, %4 : vector<32x128xf32>
    %cst_5 = arith.constant 0.000000e+00 : f32
    %6 = vector.broadcast %cst_5 : f32 to vector<32x128xf32>
    %7 = arith.maximumf %5, %6 : vector<32x128xf32>
    %8 = tpu.iota {dimensions = array<i32: 0>} : vector<32x128xi32>
    %c16_i32 = arith.constant 16 : i32
    %c0_i32 = arith.constant 0 : i32
    %9 = arith.cmpi eq, %c16_i32, %c0_i32 : i32
    %c1_i32 = arith.constant 1 : i32
    %10 = arith.select %9, %c1_i32, %c16_i32 : i32
    %11 = vector.broadcast %10 : i32 to vector<32x128xi32>
    %12 = arith.remsi %8, %11 : vector<32x128xi32>
    %c0_i32_6 = arith.constant 0 : i32
    %13 = vector.broadcast %c0_i32_6 : i32 to vector<32x128xi32>
    %14 = arith.cmpi ne, %12, %13 : vector<32x128xi32>
    %c0_i32_7 = arith.constant 0 : i32
    %15 = vector.broadcast %c0_i32_7 : i32 to vector<32x128xi32>
    %16 = arith.cmpi slt, %12, %15 : vector<32x128xi32>
    %c0_i32_8 = arith.constant 0 : i32
    %17 = arith.cmpi slt, %10, %c0_i32_8 : i32
    %18 = vector.broadcast %17 : i1 to vector<32x128xi1>
    %19 = vector.broadcast %18 : vector<32x128xi1> to vector<32x128xi1>
    %20 = arith.xori %16, %19 : vector<32x128xi1>
    %21 = arith.andi %20, %14 : vector<32x128xi1>
    %22 = vector.broadcast %10 : i32 to vector<32x128xi32>
    %23 = arith.addi %12, %22 : vector<32x128xi32>
    %24 = arith.select %21, %23, %12 : vector<32x128xi1>, vector<32x128xi32>
    %c0_i32_9 = arith.constant 0 : i32
    %25 = vector.broadcast %c0_i32_9 : i32 to vector<32x128xi32>
    %26 = arith.cmpi eq, %24, %25 : vector<32x128xi32>
    %c1_i32_10 = arith.constant 1 : i32
    %27 = tpu.dynamic_rotate %7 by %c1_i32_10 dim 0 : vector<32x128xf32>, i32 -> vector<32x128xf32>
    %cst_11 = arith.constant 0.000000e+00 : f32
    %28 = vector.broadcast %cst_11 : f32 to vector<32x128xf32>
    %29 = arith.select %26, %28, %27 : vector<32x128xi1>, vector<32x128xf32>
    %c15_i32 = arith.constant 15 : i32
    %30 = vector.broadcast %c15_i32 : i32 to vector<32x128xi32>
    %31 = arith.cmpi eq, %24, %30 : vector<32x128xi32>
    %c31_i32 = arith.constant 31 : i32
    %32 = tpu.dynamic_rotate %7 by %c31_i32 dim 0 : vector<32x128xf32>, i32 -> vector<32x128xf32>
    %cst_12 = arith.constant 0.000000e+00 : f32
    %33 = vector.broadcast %cst_12 : f32 to vector<32x128xf32>
    %34 = arith.select %31, %33, %32 : vector<32x128xi1>, vector<32x128xf32>
    %35 = tpu.concatenate %29, %7, %34 in 1 : vector<32x128xf32>, vector<32x128xf32>, vector<32x128xf32> -> vector<32x384xf32>
    %36 = arith.truncf %35 : vector<32x384xf32> to vector<32x384xbf16>
    %c0_13 = arith.constant 0 : index
    %c0_14 = arith.constant 0 : index
    %37 = vector.load %arg4[%c0_13, %c0_14] : memref<384x128xbf16, #tpu.memory_space<vmem>>, vector<384x128xbf16>
    %cst_15 = arith.constant dense<0.000000e+00> : vector<32x128xf32>
    %38 = tpu.matmul %36, %37, %cst_15 {dimension_numbers = #tpu.dot_dimension_numbers<[1], [0], [0], [1], [0, 0, 1, 1], [], []>} : vector<32x384xbf16>, vector<384x128xbf16>, vector<32x128xf32> -> vector<32x128xf32>
    %c0_16 = arith.constant 0 : index
    %c0_17 = arith.constant 0 : index
    %39 = vector.load %arg7[%c0_16, %c0_17] : memref<1x128xf32, #tpu.memory_space<vmem>>, vector<1x128xf32>
    %40 = vector.broadcast %39 : vector<1x128xf32> to vector<32x128xf32>
    %41 = arith.addf %38, %40 : vector<32x128xf32>
    %c0_18 = arith.constant 0 : index
    %c0_19 = arith.constant 0 : index
    %42 = vector.load %arg2[%c0_18, %c0_19] : memref<32x64xbf16, #tpu.memory_space<vmem>>, vector<32x64xbf16>
    %c0_20 = arith.constant 0 : index
    %c0_21 = arith.constant 0 : index
    %43 = vector.load %arg5[%c0_20, %c0_21] : memref<64x128xbf16, #tpu.memory_space<vmem>>, vector<64x128xbf16>
    %cst_22 = arith.constant dense<0.000000e+00> : vector<32x128xf32>
    %44 = tpu.matmul %42, %43, %cst_22 {dimension_numbers = #tpu.dot_dimension_numbers<[1], [0], [0], [1], [0, 0, 1, 1], [], []>} : vector<32x64xbf16>, vector<64x128xbf16>, vector<32x128xf32> -> vector<32x128xf32>
    %c0_23 = arith.constant 0 : index
    %c0_24 = arith.constant 0 : index
    %45 = vector.load %arg8[%c0_23, %c0_24] : memref<1x128xf32, #tpu.memory_space<vmem>>, vector<1x128xf32>
    %46 = vector.broadcast %45 : vector<1x128xf32> to vector<32x128xf32>
    %47 = arith.addf %44, %46 : vector<32x128xf32>
    %48 = arith.addf %41, %47 : vector<32x128xf32>
    %cst_25 = arith.constant 0.000000e+00 : f32
    %49 = vector.broadcast %cst_25 : f32 to vector<32x128xf32>
    %50 = arith.maximumf %48, %49 : vector<32x128xf32>
    %c0_26 = arith.constant 0 : index
    %c0_27 = arith.constant 0 : index
    %51 = vector.load %arg9[%c0_26, %c0_27] : memref<32x128xf32, #tpu.memory_space<vmem>>, vector<32x128xf32>
    tpu.vector_store %arg9[%c0_26, %c0_27], %50 {strides = array<i32>} : memref<32x128xf32, #tpu.memory_space<vmem>>, vector<32x128xf32>,
    return
  }
  func.func @transform_0(%arg0: i32) -> (i32, i32) {
    %c0_i32 = arith.constant 0 : i32
    %c0_i32_0 = arith.constant 0 : i32
    return %arg0, %c0_i32 : i32, i32
  }
  func.func @transform_1(%arg0: i32) -> (i32, i32) {
    %c0_i32 = arith.constant 0 : i32
    %c0_i32_0 = arith.constant 0 : i32
    return %arg0, %c0_i32 : i32, i32
  }
  func.func @transform_2(%arg0: i32) -> (i32, i32) {
    %c0_i32 = arith.constant 0 : i32
    %c0_i32_0 = arith.constant 0 : i32
    %c0_i32_1 = arith.constant 0 : i32
    return %c0_i32, %c0_i32_0 : i32, i32
  }
  func.func @transform_3(%arg0: i32) -> (i32, i32) {
    %c0_i32 = arith.constant 0 : i32
    %c0_i32_0 = arith.constant 0 : i32
    %c0_i32_1 = arith.constant 0 : i32
    return %c0_i32, %c0_i32_0 : i32, i32
  }
  func.func @transform_4(%arg0: i32) -> (i32, i32) {
    %c0_i32 = arith.constant 0 : i32
    %c0_i32_0 = arith.constant 0 : i32
    %c0_i32_1 = arith.constant 0 : i32
    return %c0_i32, %c0_i32_0 : i32, i32
  }
  func.func @transform_5(%arg0: i32) -> (i32, i32) {
    %c0_i32 = arith.constant 0 : i32
    %c0_i32_0 = arith.constant 0 : i32
    %c0_i32_1 = arith.constant 0 : i32
    return %c0_i32, %c0_i32_0 : i32, i32
  }
  func.func @transform_6(%arg0: i32) -> (i32, i32) {
    %c0_i32 = arith.constant 0 : i32
    %c0_i32_0 = arith.constant 0 : i32
    %c0_i32_1 = arith.constant 0 : i32
    return %c0_i32, %c0_i32_0 : i32, i32
  }
  func.func @transform_7(%arg0: i32) -> (i32, i32) {
    %c0_i32 = arith.constant 0 : i32
    %c0_i32_0 = arith.constant 0 : i32
    %c0_i32_1 = arith.constant 0 : i32
    return %c0_i32, %c0_i32_0 : i32, i32
  }
  func.func @transform_8(%arg0: i32) -> (i32, i32) {
    %c0_i32 = arith.constant 0 : i32
    %c0_i32_0 = arith.constant 0 : i32
    return %arg0, %c0_i32 : i32, i32
  }
}

</mosaic_0001>

<llo_original>
// kernel: tile.18
$region0: #{tile.18}
  #allocation0 [shape = 's32[1]{0}', space=sflag, size = 0x4, scoped, tag = 'scoped memory for tile.18']
  %s0 = inlined_call_operand.vmem [shape: f32[8], index: 0, kind: input, shape index: {}]
  %s1 = inlined_call_operand.vmem [shape: f32[16,8], index: 1, kind: output, shape index: {}]
  // Predicated region
  $region2: #{tile.18} parent=0 // pred_check
    _
  $region3: #{tile.18} parent=0 // pred_check_branch
    %3 = sbr.rel (0) target = $region5
  $region4: #{tile.18} parent=0 // pred_region
    _
  $region5: #{tile.18} parent=0 // pred_fallthru
    _
  %v4 = vld [vmem:[%s0] ss:$0 sm:$0xff]
  %5 = vst [vmem:[%s1] sm:$0xff] %v4
  %s6 = scalar_lea.vmem %s1, 8
  %7 = vst [vmem:[%s6] sm:$0xff] %v4

// kernel: tile.19
$region0: #{tile.19}
  %s0 = inlined_call_operand.vmem [shape: f32[16,8], index: 0, kind: input, shape index: {}]
  %s1 = inlined_call_operand.vmem [shape: f32[1,128], index: 1, kind: output, shape index: {}]
  $region1: #{tile.19} parent=0
    #allocation0 [shape = 'u8[4096]{0}', space=vmem, size = 0x1000, scoped, tag = 'scoped mem for output reshape']
    %v2 = vld [vmem:[%s0] sm:$0x1]
    %vm3 = vcmask 64512
    %4 = vst.msk [vmem:[#allocation0] sm:$0x1] %vm3, %v2
    %s5 = scalar_lea.vmem %s0, 15
    %v6 = vld [vmem:[%s5] sm:$0x1]
    %7 = vrot.lane.b32.xlu0 %v6, 120
    %v8 = vpop.permute.xlu0 %7
    %vm9 = vcmask 1048512
    %10 = vst.msk [vmem:[#allocation0] sm:$0x1] %vm9, %v8
    %s11 = scalar_lea.vmem %s0, 14
    %v12 = vld [vmem:[%s11] sm:$0x1]
    %13 = vrot.lane.b32.xlu0 %v12, 112
    %v14 = vpop.permute.xlu0 %13
    %vm15 = vcmask 982912
    %16 = vst.msk [vmem:[#allocation0] sm:$0x1] %vm15, %v14
    %s17 = scalar_lea.vmem %s0, 13
    %v18 = vld [vmem:[%s17] sm:$0x1]
    %19 = vrot.lane.b32.xlu0 %v18, 104
    %v20 = vpop.permute.xlu0 %19
    %vm21 = vcmask 917312
    %22 = vst.msk [vmem:[#allocation0] sm:$0x1] %vm21, %v20
    %s23 = scalar_lea.vmem %s0, 12
    %v24 = vld [vmem:[%s23] sm:$0x1]
    %25 = vrot.lane.b32.xlu0 %v24, 96
    %v26 = vpop.permute.xlu0 %25
    %vm27 = vcmask 851712
    %28 = vst.msk [vmem:[#allocation0] sm:$0x1] %vm27, %v26
    %s29 = scalar_lea.vmem %s0, 11
    %v30 = vld [vmem:[%s29] sm:$0x1]
    %31 = vrot.lane.b32.xlu0 %v30, 88
    %v32 = vpop.permute.xlu0 %31
    %vm33 = vcmask 786112
    %34 = vst.msk [vmem:[#allocation0] sm:$0x1] %vm33, %v32
    %s35 = scalar_lea.vmem %s0, 10
    %v36 = vld [vmem:[%s35] sm:$0x1]
    %37 = vrot.lane.b32.xlu0 %v36, 80
    %v38 = vpop.permute.xlu0 %37
    %vm39 = vcmask 720512
    %40 = vst.msk [vmem:[#allocation0] sm:$0x1] %vm39, %v38
    %s41 = scalar_lea.vmem %s0, 9
    %v42 = vld [vmem:[%s41] sm:$0x1]
    %43 = vrot.lane.b32.xlu0 %v42, 72
    %v44 = vpop.permute.xlu0 %43
    %vm45 = vcmask 654912
    %46 = vst.msk [vmem:[#allocation0] sm:$0x1] %vm45, %v44
    %s47 = scalar_lea.vmem %s0, 8
    %v48 = vld [vmem:[%s47] sm:$0x1]
    %49 = vrot.lane.b32.xlu0 %v48, 64
    %v50 = vpop.permute.xlu0 %49
    %vm51 = vcmask 589312
    %52 = vst.msk [vmem:[#allocation0] sm:$0x1] %vm51, %v50
    %s53 = scalar_lea.vmem %s0, 7
    %v54 = vld [vmem:[%s53] sm:$0x1]
    %55 = vrot.lane.b32.xlu0 %v54, 56
    %v56 = vpop.permute.xlu0 %55
    %vm57 = vcmask 523712
    %58 = vst.msk [vmem:[#allocation0] sm:$0x1] %vm57, %v56
    %s59 = scalar_lea.vmem %s0, 6
    %v60 = vld [vmem:[%s59] sm:$0x1]
    %61 = vrot.lane.b32.xlu0 %v60, 48
    %v62 = vpop.permute.xlu0 %61
    %vm63 = vcmask 458112
    %64 = vst.msk [vmem:[#allocation0] sm:$0x1] %vm63, %v62
    %s65 = scalar_lea.vmem %s0, 5
    %v66 = vld [vmem:[%s65] sm:$0x1]
    %67 = vrot.lane.b32.xlu0 %v66, 40
    %v68 = vpop.permute.xlu0 %67
    %vm69 = vcmask 392512
    %70 = vst.msk [vmem:[#allocation0] sm:$0x1] %vm69, %v68
    %s71 = scalar_lea.vmem %s0, 4
    %v72 = vld [vmem:[%s71] sm:$0x1]
    %73 = vrot.lane.b32.xlu0 %v72, 32
    %v74 = vpop.permute.xlu0 %73
    %vm75 = vcmask 326912
    %76 = vst.msk [vmem:[#allocation0] sm:$0x1] %vm75, %v74
    %s77 = scalar_lea.vmem %s0, 3
    %v78 = vld [vmem:[%s77] sm:$0x1]
    %79 = vrot.lane.b32.xlu0 %v78, 24
    %v80 = vpop.permute.xlu0 %79
    %vm81 = vcmask 261312
    %82 = vst.msk [vmem:[#allocation0] sm:$0x1] %vm81, %v80
    %s83 = scalar_lea.vmem %s0, 2
    %v84 = vld [vmem:[%s83] sm:$0x1]
    %85 = vrot.lane.b32.xlu0 %v84, 16
    %v86 = vpop.permute.xlu0 %85
    %vm87 = vcmask 195712
    %88 = vst.msk [vmem:[#allocation0] sm:$0x1] %vm87, %v86
    %s89 = scalar_lea.vmem %s0, 1
    %v90 = vld [vmem:[%s89] sm:$0x1]
    %91 = vrot.lane.b32.xlu0 %v90, 8
    %v92 = vpop.permute.xlu0 %91
    %vm93 = vcmask 130112
    %94 = vst.msk [vmem:[#allocation0] sm:$0x1] %vm93, %v92
    %s96 = sshllo.u32 0, 1
    %v98 = vld [vmem:[#allocation0] sm:%s96]
    %s99 = sshllo.u32 0, 1
    %100 = vst [vmem:[%s1] sm:%s99] %v98

// kernel: residual_block_forward.1
$region0: #{residual_block_forward.1}
  #allocation0 [shape = 'u32[]', space=smem, size = 0x4, offset = 0x4, fixed_abs, tag = 'smem constant byte address 0x4 - core index']
  #allocation1 [shape = 'u32[144,128]{1,0:T(1,128)}', space=vmem, size = 0x12000, scoped, tag = 'internal scratch']
  %s0 = inlined_call_operand.vmem [shape: bf16[64,192], index: 0, kind: input, shape index: {}]
  %s1 = inlined_call_operand.vmem [shape: bf16[64,64], index: 1, kind: input, shape index: {}]
  %s2 = inlined_call_operand.vmem [shape: bf16[192,128], index: 2, kind: input, shape index: {}]
  %s3 = inlined_call_operand.vmem [shape: bf16[384,128], index: 3, kind: input, shape index: {}]
  %s4 = inlined_call_operand.vmem [shape: bf16[64,128], index: 4, kind: input, shape index: {}]
  %s5 = inlined_call_operand.vmem [shape: f32[1,128], index: 5, kind: input, shape index: {}]
  %s6 = inlined_call_operand.vmem [shape: f32[1,128], index: 6, kind: input, shape index: {}]
  %s7 = inlined_call_operand.vmem [shape: f32[1,128], index: 7, kind: input, shape index: {}]
  %s8 = inlined_call_operand.vmem [shape: f32[64,128], index: 8, kind: output, shape index: {}]
  %s9 = sld [smem:[#allocation0]]
  $region65: #{residual_block_forward.1} parent=0
    _
  %s11 = ssub.s32 1, %s9
  %s12 = scalar_select 0, %s11, %s9
  loop: start=0, step=1, limit=4
  $region2: #{residual_block_forward.1} parent=0 // loop_pre_header
    _
  $region3: #{residual_block_forward.1} parent=0 // loop_header
    %s14 = sphi 0, %s18
    %p15 = scmp.ge.s32.totalorder %s14, 4
    %s24 = sphi 0, %s26
    %s27 = sphi 0, %s24
    %s28 = sphi 0, %s27
    %s44 = sphi 0, %s28
    %s50 = sphi 0, %s52
    %s53 = sphi 0, %s50
    %s54 = sphi 0, %s53
    %s70 = sphi 0, %s54
    %s74 = sphi 0, %s74
    %s76 = sphi 0, %s74
    %s77 = sphi 0, %s76
    %s91 = sphi 0, %s77
    %s95 = sphi 0, %s95
    %s97 = sphi 0, %s95
    %s98 = sphi 0, %s97
    %s112 = sphi 0, %s98
    %s116 = sphi 0, %s116
    %s118 = sphi 0, %s116
    %s119 = sphi 0, %s118
    %s133 = sphi 0, %s119
    %s137 = sphi 0, %s137
    %s139 = sphi 0, %s137
    %s140 = sphi 0, %s139
    %s154 = sphi 0, %s140
    %s158 = sphi 0, %s158
    %s160 = sphi 0, %s158
    %s161 = sphi 0, %s160
    %s175 = sphi 0, %s161
    %s179 = sphi 0, %s179
    %s181 = sphi 0, %s179
    %s182 = sphi 0, %s181
    %s196 = sphi 0, %s182
    %s202 = sphi 0, %s204
    %s205 = sphi 0, %s202
    %s206 = sphi 0, %s205
    %s222 = sphi 0, %s206
  $region4: #{residual_block_forward.1} parent=0 // loop_header_branch
    %17 = sbr.rel (%p15) target = $region8
  $region5: #{residual_block_forward.1} parent=0 // loop_body
    %s19 = ssub.s32 %s14, 1
    %s20 = ssub.s32 %s14, 2
    %s21 = sadd.s32 %s14, 1
    %s22 = ssub.s32 %s14, %s21
    %p23 = scmp.eq.s32.totalorder %s22, 0
    %s25 = sadd.s32 %s24, 1
    %s26 = scalar_select %p23, %s24, %s25
    %p29 = pneg %p23
    %p30 = scmp.eq.s32.totalorder %s14, 1
    %p31 = por %p29, %p30
    %p32 = scmp.ne.s32.totalorder %s24, %s27
    %p33 = scmp.eq.s32.totalorder %s14, 0
    %p34 = por %p32, %p33
    %p35 = scmp.ne.s32.totalorder %s24, %s27
    %p36 = scmp.eq.s32.totalorder %s19, 1
    %p37 = por %p35, %p36
    %p38 = scmp.ne.s32.totalorder %s27, %s28
    %p39 = scmp.eq.s32.totalorder %s19, 0
    %p40 = por %p38, %p39
    %p41 = scmp.ne.s32.totalorder %s27, %s28
    %p42 = scmp.eq.s32.totalorder %s20, 1
    %p43 = por %p41, %p42
    %p45 = scmp.ne.s32.totalorder %s28, %s44
    %p46 = scmp.eq.s32.totalorder %s20, 0
    %p47 = por %p45, %p46
    %s48 = ssub.s32 %s14, %s21
    %p49 = scmp.eq.s32.totalorder %s48, 0
    %s51 = sadd.s32 %s50, 1
    %s52 = scalar_select %p49, %s50, %s51
    %p55 = pneg %p49
    %p56 = scmp.eq.s32.totalorder %s14, 1
    %p57 = por %p55, %p56
    %p58 = scmp.ne.s32.totalorder %s50, %s53
    %p59 = scmp.eq.s32.totalorder %s14, 0
    %p60 = por %p58, %p59
    %p61 = scmp.ne.s32.totalorder %s50, %s53
    %p62 = scmp.eq.s32.totalorder %s19, 1
    %p63 = por %p61, %p62
    %p64 = scmp.ne.s32.totalorder %s53, %s54
    %p65 = scmp.eq.s32.totalorder %s19, 0
    %p66 = por %p64, %p65
    %p67 = scmp.ne.s32.totalorder %s53, %s54
    %p68 = scmp.eq.s32.totalorder %s20, 1
    %p69 = por %p67, %p68
    %p71 = scmp.ne.s32.totalorder %s54, %s70
    %p72 = scmp.eq.s32.totalorder %s20, 0
    %p73 = por %p71, %p72
    %s75 = sadd.s32 %s74, 1
    %p78 = scmp.eq.s32.totalorder %s14, 1
    %p79 = scmp.ne.s32.totalorder %s74, %s76
    %p80 = scmp.eq.s32.totalorder %s14, 0
    %p81 = por %p79, %p80
    %p82 = scmp.ne.s32.totalorder %s74, %s76
    %p83 = scmp.eq.s32.totalorder %s19, 1
    %p84 = por %p82, %p83
    %p85 = scmp.ne.s32.totalorder %s76, %s77
    %p86 = scmp.eq.s32.totalorder %s19, 0
    %p87 = por %p85, %p86
    %p88 = scmp.ne.s32.totalorder %s76, %s77
    %p89 = scmp.eq.s32.totalorder %s20, 1
    %p90 = por %p88, %p89
    %p92 = scmp.ne.s32.totalorder %s77, %s91
    %p93 = scmp.eq.s32.totalorder %s20, 0
    %p94 = por %p92, %p93
    %s96 = sadd.s32 %s95, 1
    %p99 = scmp.eq.s32.totalorder %s14, 1
    %p100 = scmp.ne.s32.totalorder %s95, %s97
    %p101 = scmp.eq.s32.totalorder %s14, 0
    %p102 = por %p100, %p101
    %p103 = scmp.ne.s32.totalorder %s95, %s97
    %p104 = scmp.eq.s32.totalorder %s19, 1
    %p105 = por %p103, %p104
    %p106 = scmp.ne.s32.totalorder %s97, %s98
    %p107 = scmp.eq.s32.totalorder %s19, 0
    %p108 = por %p106, %p107
    %p109 = scmp.ne.s32.totalorder %s97, %s98
    %p110 = scmp.eq.s32.totalorder %s20, 1
    %p111 = por %p109, %p110
    %p113 = scmp.ne.s32.totalorder %s98, %s112
    %p114 = scmp.eq.s32.totalorder %s20, 0
    %p115 = por %p113, %p114
    %s117 = sadd.s32 %s116, 1
    %p120 = scmp.eq.s32.totalorder %s14, 1
    %p121 = scmp.ne.s32.totalorder %s116, %s118
    %p122 = scmp.eq.s32.totalorder %s14, 0
    %p123 = por %p121, %p122
    %p124 = scmp.ne.s32.totalorder %s116, %s118
    %p125 = scmp.eq.s32.totalorder %s19, 1
    %p126 = por %p124, %p125
    %p127 = scmp.ne.s32.totalorder %s118, %s119
    %p128 = scmp.eq.s32.totalorder %s19, 0
    %p129 = por %p127, %p128
    %p130 = scmp.ne.s32.totalorder %s118, %s119
    %p131 = scmp.eq.s32.totalorder %s20, 1
    %p132 = por %p130, %p131
    %p134 = scmp.ne.s32.totalorder %s119, %s133
    %p135 = scmp.eq.s32.totalorder %s20, 0
    %p136 = por %p134, %p135
    %s138 = sadd.s32 %s137, 1
    %p141 = scmp.eq.s32.totalorder %s14, 1
    %p142 = scmp.ne.s32.totalorder %s137, %s139
    %p143 = scmp.eq.s32.totalorder %s14, 0
    %p144 = por %p142, %p143
    %p145 = scmp.ne.s32.totalorder %s137, %s139
    %p146 = scmp.eq.s32.totalorder %s19, 1
    %p147 = por %p145, %p146
    %p148 = scmp.ne.s32.totalorder %s139, %s140
    %p149 = scmp.eq.s32.totalorder %s19, 0
    %p150 = por %p148, %p149
    %p151 = scmp.ne.s32.totalorder %s139, %s140
    %p152 = scmp.eq.s32.totalorder %s20, 1
    %p153 = por %p151, %p152
    %p155 = scmp.ne.s32.totalorder %s140, %s154
    %p156 = scmp.eq.s32.totalorder %s20, 0
    %p157 = por %p155, %p156
    %s159 = sadd.s32 %s158, 1
    %p162 = scmp.eq.s32.totalorder %s14, 1
    %p163 = scmp.ne.s32.totalorder %s158, %s160
    %p164 = scmp.eq.s32.totalorder %s14, 0
    %p165 = por %p163, %p164
    %p166 = scmp.ne.s32.totalorder %s158, %s160
    %p167 = scmp.eq.s32.totalorder %s19, 1
    %p168 = por %p166, %p167
    %p169 = scmp.ne.s32.totalorder %s160, %s161
    %p170 = scmp.eq.s32.totalorder %s19, 0
    %p171 = por %p169, %p170
    %p172 = scmp.ne.s32.totalorder %s160, %s161
    %p173 = scmp.eq.s32.totalorder %s20, 1
    %p174 = por %p172, %p173
    %p176 = scmp.ne.s32.totalorder %s161, %s175
    %p177 = scmp.eq.s32.totalorder %s20, 0
    %p178 = por %p176, %p177
    %s180 = sadd.s32 %s179, 1
    %p183 = scmp.eq.s32.totalorder %s14, 1
    %p184 = scmp.ne.s32.totalorder %s179, %s181
    %p185 = scmp.eq.s32.totalorder %s14, 0
    %p186 = por %p184, %p185
    %p187 = scmp.ne.s32.totalorder %s179, %s181
    %p188 = scmp.eq.s32.totalorder %s19, 1
    %p189 = por %p187, %p188
    %p190 = scmp.ne.s32.totalorder %s181, %s182
    %p191 = scmp.eq.s32.totalorder %s19, 0
    %p192 = por %p190, %p191
    %p193 = scmp.ne.s32.totalorder %s181, %s182
    %p194 = scmp.eq.s32.totalorder %s20, 1
    %p195 = por %p193, %p194
    %p197 = scmp.ne.s32.totalorder %s182, %s196
    %p198 = scmp.eq.s32.totalorder %s20, 0
    %p199 = por %p197, %p198
    %s200 = ssub.s32 %s14, %s21
    %p201 = scmp.eq.s32.totalorder %s200, 0
    %s203 = sadd.s32 %s202, 1
    %s204 = scalar_select %p201, %s202, %s203
    %p207 = pneg %p201
    %p208 = scmp.eq.s32.totalorder %s14, 1
    %p209 = por %p207, %p208
    %p210 = scmp.ne.s32.totalorder %s202, %s205
    %p211 = scmp.eq.s32.totalorder %s14, 0
    %p212 = por %p210, %p211
    %p213 = scmp.ne.s32.totalorder %s202, %s205
    %p214 = scmp.eq.s32.totalorder %s19, 1
    %p215 = por %p213, %p214
    %p216 = scmp.ne.s32.totalorder %s205, %s206
    %p217 = scmp.eq.s32.totalorder %s19, 0
    %p218 = por %p216, %p217
    %p219 = scmp.ne.s32.totalorder %s205, %s206
    %p220 = scmp.eq.s32.totalorder %s20, 1
    %p221 = por %p219, %p220
    %p223 = scmp.ne.s32.totalorder %s206, %s222
    %p224 = scmp.eq.s32.totalorder %s20, 0
    %p225 = por %p223, %p224
    %p226 = scmp.le.s32.totalorder 1, %s14
    %p227 = scmp.lt.s32.totalorder %s14, 3
    %p228 = pnand %p226, %p227
    %p229 = pneg %p228
    // Predicated region
    $region9: #{residual_block_forward.1} parent=5 // pred_check
      _
    $region10: #{residual_block_forward.1} parent=5 // pred_check_branch
      %231 = sbr.rel (%p228) target = $region12
    $region11: #{residual_block_forward.1} parent=5 // pred_region
      %s232 = ssub.s32 %s14, 1
      // Predicated region
      $region13: #{residual_block_forward.1} parent=11 // pred_check
        %p233 = pneg %p87
      $region14: #{residual_block_forward.1} parent=11 // pred_check_branch
        %235 = sbr.rel (%p233) target = $region16
      $region15: #{residual_block_forward.1} parent=11 // pred_region
        _
      $region16: #{residual_block_forward.1} parent=11 // pred_fallthru
        _
      // Predicated region
      $region17: #{residual_block_forward.1} parent=11 // pred_check
        %p236 = pneg %p108
      $region18: #{residual_block_forward.1} parent=11 // pred_check_branch
        %238 = sbr.rel (%p236) target = $region20
      $region19: #{residual_block_forward.1} parent=11 // pred_region
        _
      $region20: #{residual_block_forward.1} parent=11 // pred_fallthru
        _
      // Predicated region
      $region21: #{residual_block_forward.1} parent=11 // pred_check
        %p239 = pneg %p129
      $region22: #{residual_block_forward.1} parent=11 // pred_check_branch
        %241 = sbr.rel (%p239) target = $region24
      $region23: #{residual_block_forward.1} parent=11 // pred_region
        _
      $region24: #{residual_block_forward.1} parent=11 // pred_fallthru
        _
      // Predicated region
      $region25: #{residual_block_forward.1} parent=11 // pred_check
        %p242 = pneg %p150
      $region26: #{residual_block_forward.1} parent=11 // pred_check_branch
        %244 = sbr.rel (%p242) target = $region28
      $region27: #{residual_block_forward.1} parent=11 // pred_region
        _
      $region28: #{residual_block_forward.1} parent=11 // pred_fallthru
        _
      // Predicated region
      $region29: #{residual_block_forward.1} parent=11 // pred_check
        %p245 = pneg %p171
      $region30: #{residual_block_forward.1} parent=11 // pred_check_branch
        %247 = sbr.rel (%p245) target = $region32
      $region31: #{residual_block_forward.1} parent=11 // pred_region
        _
      $region32: #{residual_block_forward.1} parent=11 // pred_fallthru
        _
      // Predicated region
      $region33: #{residual_block_forward.1} parent=11 // pred_check
        %p248 = pneg %p192
      $region34: #{residual_block_forward.1} parent=11 // pred_check_branch
        %250 = sbr.rel (%p248) target = $region36
      $region35: #{residual_block_forward.1} parent=11 // pred_region
        _
      $region36: #{residual_block_forward.1} parent=11 // pred_fallthru
        _
    $region12: #{residual_block_forward.1} parent=5 // pred_fallthru
      _
    %p251 = scmp.lt.s32.totalorder %s14, 2
    // Predicated region
    $region37: #{residual_block_forward.1} parent=5 // pred_check
      %p252 = pneg %p251
    $region38: #{residual_block_forward.1} parent=5 // pred_check_branch
      %254 = sbr.rel (%p252) target = $region40
    $region39: #{residual_block_forward.1} parent=5 // pred_region
      // Predicated region
      $region41: #{residual_block_forward.1} parent=39 // pred_check
        %p255 = pneg %p34
      $region42: #{residual_block_forward.1} parent=39 // pred_check_branch
        %257 = sbr.rel (%p255) target = $region44
      $region43: #{residual_block_forward.1} parent=39 // pred_region
        %s258 = smul.u32 4, %s14
        %p259 = scmp.lt.s32.totalorder %s258, 7
        %s260 = scalar_select %p259, %s258, 7
        %s261 = smul.addr %s260, 2
        %s262 = smul.addr %s261, 4
        %s263 = scalar_lea.vmem %s0, %s262
        %s264 = smul.u32 4, %s14
      $region44: #{residual_block_forward.1} parent=39 // pred_fallthru
        _
      // Predicated region
      $region45: #{residual_block_forward.1} parent=39 // pred_check
        %p265 = pneg %p60
      $region46: #{residual_block_forward.1} parent=39 // pred_check_branch
        %267 = sbr.rel (%p265) target = $region48
      $region47: #{residual_block_forward.1} parent=39 // pred_region
        %s268 = smul.u32 4, %s14
        %p269 = scmp.lt.s32.totalorder %s268, 7
        %s270 = scalar_select %p269, %s268, 7
        %s271 = smul.addr %s270, 4
        %s272 = scalar_lea.vmem %s1, %s271
        %s273 = smul.u32 4, %s14
      $region48: #{residual_block_forward.1} parent=39 // pred_fallthru
        _
    $region40: #{residual_block_forward.1} parent=5 // pred_fallthru
      _
    %p274 = scmp.le.s32.totalorder 1, %s14
    %p275 = scmp.lt.s32.totalorder %s14, 3
    %p276 = pnand %p274, %p275
    %p277 = pneg %p276
    // Predicated region
    $region49: #{residual_block_forward.1} parent=5 // pred_check
      _
    $region50: #{residual_block_forward.1} parent=5 // pred_check_branch
      %279 = sbr.rel (%p276) target = $region52
    $region51: #{residual_block_forward.1} parent=5 // pred_region
      %s280 = ssub.s32 %s14, 1
      %s281 = smul.u32 4, %s19
      %p282 = scmp.lt.s32.totalorder %s281, 7
      %s283 = scalar_select %p282, %s281, 7
      %s284 = smul.addr %s283, 2
      %s285 = smul.addr %s284, 4
      %s286 = scalar_lea.vmem %s0, %s285
      %p287 = pneg %p40
      %p288 = pneg %p37
      %s289 = smul.u32 4, %s19
      %p290 = scmp.lt.s32.totalorder %s289, 7
      %s291 = scalar_select %p290, %s289, 7
      %s292 = smul.addr %s291, 4
      %s293 = scalar_lea.vmem %s1, %s292
      %p294 = pneg %p66
      %p295 = pneg %p63
      %p296 = pneg %p87
      %p297 = pneg %p84
      %p298 = pneg %p108
      %p299 = pneg %p105
      %p300 = pneg %p129
      %p301 = pneg %p126
      %p302 = pneg %p150
      %p303 = pneg %p147
      %p304 = pneg %p171
      %p305 = pneg %p168
      %p306 = pneg %p192
      %p307 = pneg %p189
      %p308 = pneg %p218
      %p309 = pneg %p215
      %s310 = smul.u32 4, %s19
      %p311 = scmp.lt.s32.totalorder %s310, 7
      %s312 = scalar_select %p311, %s310, 7
      %s313 = smul.addr %s312, 8
      %s314 = scalar_lea.vmem %s8, %s313
      %s315 = smul.u32 4, %s19
      %p316 = scmp.lt.s32.totalorder %s315, 7
      %s317 = scalar_select %p316, %s315, 7
      %s318 = smul.addr %s317, 2
      %s319 = smul.addr %s318, 4
      %s320 = scalar_lea.vmem %s0, %s319
      %s321 = smul.u32 4, %s19
      %s322 = smul.u32 4, %s19
      %p323 = scmp.lt.s32.totalorder %s322, 7
      %s324 = scalar_select %p323, %s322, 7
      %s325 = smul.addr %s324, 4
      %s326 = scalar_lea.vmem %s1, %s325
      %s327 = smul.u32 4, %s19
      %s328 = smul.u32 4, %s19
      %p329 = scmp.lt.s32.totalorder %s328, 7
      %s330 = scalar_select %p329, %s328, 7
      %s331 = smul.addr %s330, 8
      %s332 = scalar_lea.vmem %s8, %s331
      %s333 = smul.u32 4, %s19
      %v335 = vld [vmem:[%s320] sm:$0xff]
      %v336 = vld [vmem:[%s320 + $0x8] sm:$0xff]
      %v337 = vld [vmem:[%s320 + $0x10] sm:$0xff]
      %v338 = vld [vmem:[%s320 + $0x18] sm:$0xff]
      %v339 = vld [vmem:[%s2] sm:$0xf]
      %v340 = vld [vmem:[%s2 + $0x4] sm:$0xf]
      %v341 = vld [vmem:[%s2 + $0x8] sm:$0xf]
      %v342 = vld [vmem:[%s2 + $0xc] sm:$0xf]
      %v343 = vld [vmem:[%s2 + $0x10] sm:$0xf]
      %v344 = vld [vmem:[%s2 + $0x14] sm:$0xf]
      %v345 = vld [vmem:[%s2 + $0x18] sm:$0xf]
      %v346 = vld [vmem:[%s2 + $0x1c] sm:$0xf]
      %v347 = vld [vmem:[%s2 + $0x20] sm:$0xf]
      %v348 = vld [vmem:[%s2 + $0x24] sm:$0xf]
      %v349 = vld [vmem:[%s2 + $0x28] sm:$0xf]
      %v350 = vld [vmem:[%s2 + $0x2c] sm:$0xf]
      %v351 = vld [vmem:[%s2 + $0x30] sm:$0xf]
      %v352 = vld [vmem:[%s2 + $0x34] sm:$0xf]
      %v353 = vld [vmem:[%s2 + $0x38] sm:$0xf]
      %v354 = vld [vmem:[%s2 + $0x3c] sm:$0xf]
      %v355 = vld [vmem:[%s2 + $0x40] sm:$0xf]
      %v356 = vld [vmem:[%s2 + $0x44] sm:$0xf]
      %v357 = vld [vmem:[%s2 + $0x48] sm:$0xf]
      %v358 = vld [vmem:[%s2 + $0x4c] sm:$0xf]
      %v359 = vld [vmem:[%s2 + $0x50] sm:$0xf]
      %v360 = vld [vmem:[%s2 + $0x54] sm:$0xf]
      %v361 = vld [vmem:[%s2 + $0x58] sm:$0xf]
      %v362 = vld [vmem:[%s2 + $0x5c] sm:$0xf]
      %v363 = vld [vmem:[%s5] sm:$0x1]
      %v365 = vlaneseq
      %v366 = vshrl.u32 %v365, 7
      %v367 = vsub.s32 0, %v366
      %v368 = vrot.slane %v363, %v367
      %v374 = vunpack.c.l.b16 %v335
      %v375 = vunpack.c.h.b16 %v335
      %v376 = vunpack.c.l.b16 %v336
      %v377 = vunpack.c.h.b16 %v336
      %v378 = vunpack.c.l.b16 %v337
      %v379 = vunpack.c.h.b16 %v337
      %v380 = vunpack.c.l.b16 %v338
      %v381 = vunpack.c.h.b16 %v338
      %v382 = vpack.c.b16 %v376, %v374
      %v383 = vpack.c.b16 %v377, %v375
      %v384 = vpack.c.b16 %v380, %v378
      %v385 = vpack.c.b16 %v381, %v379
      %v412 = vunpack.c.l.b16 %v339
      %v413 = vunpack.c.l.b16 %v340
      %v414 = vunpack.c.l.b16 %v341
      %v415 = vunpack.c.l.b16 %v342
      %v416 = vunpack.c.l.b16 %v343
      %v417 = vunpack.c.l.b16 %v344
      %v418 = vunpack.c.l.b16 %v345
      %v419 = vunpack.c.l.b16 %v346
      %v420 = vunpack.c.l.b16 %v347
      %v421 = vunpack.c.l.b16 %v348
      %v422 = vunpack.c.l.b16 %v349
      %v423 = vunpack.c.l.b16 %v350
      %v424 = vunpack.c.l.b16 %v351
      %v425 = vunpack.c.l.b16 %v352
      %v426 = vunpack.c.l.b16 %v353
      %v427 = vunpack.c.l.b16 %v354
      %v428 = vunpack.c.l.b16 %v355
      %v429 = vunpack.c.l.b16 %v356
      %v430 = vunpack.c.l.b16 %v357
      %v431 = vunpack.c.l.b16 %v358
      %v432 = vunpack.c.l.b16 %v359
      %v433 = vunpack.c.l.b16 %v360
      %v434 = vunpack.c.l.b16 %v361
      %v435 = vunpack.c.l.b16 %v362
      %v436 = vpack.c.b16 %v413, %v412
      %v437 = vpack.c.b16 %v415, %v414
      %v438 = vpack.c.b16 %v417, %v416
      %v439 = vpack.c.b16 %v419, %v418
      %v440 = vpack.c.b16 %v421, %v420
      %v441 = vpack.c.b16 %v423, %v422
      %v442 = vpack.c.b16 %v425, %v424
      %v443 = vpack.c.b16 %v427, %v426
      %v444 = vpack.c.b16 %v429, %v428
      %v445 = vpack.c.b16 %v431, %v430
      %v446 = vpack.c.b16 %v433, %v432
      %v447 = vpack.c.b16 %v435, %v434
      %vm460 = vcmask 523264
      %v462 = vsel %vm460, %v383, 0
      %v465 = vsel %vm460, %v385, 0
      %467 = vmatprep.subr.bf16.mxu0 0
      %468 = vmatpush1.bf16.msra.mxu0 %v436
      %469 = vmatprep.subr.bf16.mxu0 0
      %470 = vmatpush1.bf16.msra.mxu0 %v437
      %471 = vmatprep.subr.bf16.mxu0 0
      %472 = vmatpush1.bf16.msra.mxu0 %v438
      %473 = vmatprep.subr.bf16.mxu0 0
      %474 = vmatpush1.bf16.msra.mxu0 %v439
      %475 = vmatprep.subr.bf16.mxu0 0
      %476 = vmatpush1.bf16.msra.mxu0 %v440
      %477 = vmatprep.subr.bf16.mxu0 0
      %478 = vmatpush1.bf16.msra.mxu0 %v441
      %479 = vmatprep.subr.bf16.mxu0 0
      %480 = vmatpush1.bf16.msra.mxu0 %v442
      %481 = vmatprep.subr.bf16.mxu0 0
      %482 = vmatpush1.bf16.msra.mxu0 %v443
      %483 = vmatprep.subr.bf16.mxu0 0
      %484 = vmatpush1.bf16.msra.mxu0 %v444
      %485 = vmatprep.subr.bf16.mxu0 0
      %486 = vmatpush1.bf16.msra.mxu0 %v445
      %487 = vmatprep.subr.bf16.mxu0 0
      %488 = vmatpush1.bf16.msra.mxu0 %v446
      %489 = vmatprep.subr.bf16.mxu0 0
      %490 = vmatpush1.bf16.msra.mxu0 %v447
      %491 = vmatprep.subr.bf16.mxu0 0
      %492 = vmatpush1.bf16.msra.mxu0 0
      %493 = vmatprep.subr.bf16.mxu0 0
      %494 = vmatpush1.bf16.msra.mxu0 0
      %495 = vmatprep.subr.bf16.mxu0 0
      %496 = vmatpush1.bf16.msra.mxu0 0
      %497 = vmatprep.subr.bf16.mxu0 0
      %498 = vmatpush1.bf16.msra.mxu0 0
      %499 = vmatprep.mubr.bf16.mxu0 %v462
      %500 = vmatmul.mubr.bf16.gmra.mrb[0].mxu0 %v382
      %v501 = vpop.f32.mrb[0].mxu0
      %v502 = vadd.f32 %v368, %v501
      %v503 = vpop.f32.mrb[0].mxu0
      %v504 = vpop.f32.mrb[0].mxu0
      %v505 = vadd.f32 %v368, %v504
      %v506 = vpop.f32.mrb[0].mxu0
      %507 = vmatprep.mubr.bf16.mxu0 %v465
      %508 = vmatmul.mubr.bf16.gmra.mrb[0].mxu0 %v384
      %v509 = vpop.f32.mrb[0].mxu0
      %v510 = vadd.f32 %v368, %v509
      %v511 = vpop.f32.mrb[0].mxu0
      %v512 = vpop.f32.mrb[0].mxu0
      %v513 = vadd.f32 %v368, %v512
      %v514 = vpop.f32.mrb[0].mxu0
      %515 = vdwg.mxu0
      %v516 = vmax.f32 %v502, 0.0
      %v517 = vmax.f32 %v505, 0.0
      %v518 = vmax.f32 %v510, 0.0
      %v519 = vmax.f32 %v513, 0.0
      %v520 = vlaneseq
      %v521 = vshrl.u32 %v520, 7
      %v522 = vadd.s32 %v521, 8
      %v523 = vadd.s32 %v521, 16
      %v524 = vadd.s32 %v521, 24
      %vm525 = vcmp.lt.s32.totalorder %v521, 0
      %v526 = vsub.s32 0, %v521
      %v527 = vsel %vm525, %v526, %v521
      %v528 = vshrl.u32 %v527, 4
      %v529 = vand.u32 %v527, 15
      %v530 = vsub.s32 0, %v529
      %v531 = vsel %vm525, %v530, %v529
      %vm532 = vcmp.lt.s32.totalorder %v522, 0
      %v533 = vsub.s32 0, %v522
      %v534 = vsel %vm532, %v533, %v522
      %v535 = vshrl.u32 %v534, 4
      %v536 = vand.u32 %v534, 15
      %v537 = vsub.s32 0, %v536
      %v538 = vsel %vm532, %v537, %v536
      %vm539 = vcmp.lt.s32.totalorder %v523, 0
      %v540 = vsub.s32 0, %v523
      %v541 = vsel %vm539, %v540, %v523
      %v542 = vshrl.u32 %v541, 4
      %v543 = vand.u32 %v541, 15
      %v544 = vsub.s32 0, %v543
      %v545 = vsel %vm539, %v544, %v543
      %vm546 = vcmp.lt.s32.totalorder %v524, 0
      %v547 = vsub.s32 0, %v524
      %v548 = vsel %vm546, %v547, %v524
      %v549 = vshrl.u32 %v548, 4
      %v550 = vand.u32 %v548, 15
      %v551 = vsub.s32 0, %v550
      %v552 = vsel %vm546, %v551, %v550
      %vm553 = vcmp.ne.s32.totalorder %v531, 0
      %vm554 = vcmp.ne.s32.totalorder %v538, 0
      %vm555 = vcmp.ne.s32.totalorder %v545, 0
      %vm556 = vcmp.ne.s32.totalorder %v552, 0
      %vm557 = vcmp.lt.s32.totalorder %v531, 0
      %vm558 = vcmp.lt.s32.totalorder %v538, 0
      %vm559 = vcmp.lt.s32.totalorder %v545, 0
      %vm560 = vcmp.lt.s32.totalorder %v552, 0
      %vm561 = vmand %vm557, %vm553
      %vm562 = vmand %vm558, %vm554
      %vm563 = vmand %vm559, %vm555
      %vm564 = vmand %vm560, %vm556
      %v565 = vadd.s32 %v531, 16
      %v566 = vadd.s32 %v538, 16
      %v567 = vadd.s32 %v545, 16
      %v568 = vadd.s32 %v552, 16
      %v569 = vsel %vm561, %v565, %v531
      %v570 = vsel %vm562, %v566, %v538
      %v571 = vsel %vm563, %v567, %v545
      %v572 = vsel %vm564, %v568, %v552
      %vm573 = vcmp.eq.s32.totalorder %v569, 0
      %vm574 = vcmp.eq.s32.totalorder %v570, 0
      %vm575 = vcmp.eq.s32.totalorder %v571, 0
      %vm576 = vcmp.eq.s32.totalorder %v572, 0
      %v577 = vrot.slane %v516, 7
      %v578 = vrot.slane %v517, 7
      %v579 = vrot.slane %v518, 7
      %v580 = vrot.slane %v519, 7
      %vm581 = vcmp.lt.s32.totalorder %v521, 1
      %v582 = vsel %vm581, %v579, %v580
      %v583 = vsel %vm581, %v578, %v579
      %v584 = vsel %vm581, %v577, %v578
      %v585 = vsel %vm581, %v580, %v577
      %v586 = vsel %vm573, 0.0, %v585
      %v587 = vsel %vm574, 0.0, %v584
      %v588 = vsel %vm575, 0.0, %v583
      %v589 = vsel %vm576, 0.0, %v582
      %vm590 = vcmp.eq.s32.totalorder %v569, 15
      %vm591 = vcmp.eq.s32.totalorder %v570, 15
      %vm592 = vcmp.eq.s32.totalorder %v571, 15
      %vm593 = vcmp.eq.s32.totalorder %v572, 15
      %v594 = vrot.slane %v516, 1
      %v595 = vrot.slane %v517, 1
      %v596 = vrot.slane %v518, 1
      %v597 = vrot.slane %v519, 1
      %vm598 = vcmp.lt.s32.totalorder %v521, 7
      %v599 = vsel %vm598, %v596, %v597
      %v600 = vsel %vm598, %v595, %v596
      %v601 = vsel %vm598, %v594, %v595
      %v602 = vsel %vm598, %v597, %v594
      %v603 = vsel %vm590, 0.0, %v601
      %v604 = vsel %vm591, 0.0, %v600
      %v605 = vsel %vm592, 0.0, %v599
      %v606 = vsel %vm593, 0.0, %v602
      %v607 = vpack.c.bf16 %v587, %v586
      %v608 = vpack.c.bf16 %v517, %v516
      %v609 = vpack.c.bf16 %v604, %v603
      %v610 = vpack.c.bf16 %v589, %v588
      %v611 = vpack.c.bf16 %v519, %v518
      %v612 = vpack.c.bf16 %v606, %v605
      %v613 = vld [vmem:[%s3] sm:$0xf]
      %v614 = vld [vmem:[%s3 + $0x4] sm:$0xf]
      %v615 = vld [vmem:[%s3 + $0x8] sm:$0xf]
      %v616 = vld [vmem:[%s3 + $0xc] sm:$0xf]
      %v617 = vld [vmem:[%s3 + $0x10] sm:$0xf]
      %v618 = vld [vmem:[%s3 + $0x14] sm:$0xf]
      %v619 = vld [vmem:[%s3 + $0x18] sm:$0xf]
      %v620 = vld [vmem:[%s3 + $0x1c] sm:$0xf]
      %v621 = vld [vmem:[%s3 + $0x20] sm:$0xf]
      %v622 = vld [vmem:[%s3 + $0x24] sm:$0xf]
      %v623 = vld [vmem:[%s3 + $0x28] sm:$0xf]
      %v624 = vld [vmem:[%s3 + $0x2c] sm:$0xf]
      %v625 = vld [vmem:[%s3 + $0x30] sm:$0xf]
      %v626 = vld [vmem:[%s3 + $0x34] sm:$0xf]
      %v627 = vld [vmem:[%s3 + $0x38] sm:$0xf]
      %v628 = vld [vmem:[%s3 + $0x3c] sm:$0xf]
      %v629 = vld [vmem:[%s3 + $0x40] sm:$0xf]
      %v630 = vld [vmem:[%s3 + $0x44] sm:$0xf]
      %v631 = vld [vmem:[%s3 + $0x48] sm:$0xf]
      %v632 = vld [vmem:[%s3 + $0x4c] sm:$0xf]
      %v633 = vld [vmem:[%s3 + $0x50] sm:$0xf]
      %v634 = vld [vmem:[%s3 + $0x54] sm:$0xf]
      %v635 = vld [vmem:[%s3 + $0x58] sm:$0xf]
      %v636 = vld [vmem:[%s3 + $0x5c] sm:$0xf]
      %v637 = vld [vmem:[%s3 + $0x60] sm:$0xf]
      %v638 = vld [vmem:[%s3 + $0x64] sm:$0xf]
      %v639 = vld [vmem:[%s3 + $0x68] sm:$0xf]
      %v640 = vld [vmem:[%s3 + $0x6c] sm:$0xf]
      %v641 = vld [vmem:[%s3 + $0x70] sm:$0xf]
      %v642 = vld [vmem:[%s3 + $0x74] sm:$0xf]
      %v643 = vld [vmem:[%s3 + $0x78] sm:$0xf]
      %v644 = vld [vmem:[%s3 + $0x7c] sm:$0xf]
      %v645 = vld [vmem:[%s3 + $0x80] sm:$0xf]
      %v646 = vld [vmem:[%s3 + $0x84] sm:$0xf]
      %v647 = vld [vmem:[%s3 + $0x88] sm:$0xf]
      %v648 = vld [vmem:[%s3 + $0x8c] sm:$0xf]
      %v649 = vld [vmem:[%s3 + $0x90] sm:$0xf]
      %v650 = vld [vmem:[%s3 + $0x94] sm:$0xf]
      %v651 = vld [vmem:[%s3 + $0x98] sm:$0xf]
      %v652 = vld [vmem:[%s3 + $0x9c] sm:$0xf]
      %v653 = vld [vmem:[%s3 + $0xa0] sm:$0xf]
      %v654 = vld [vmem:[%s3 + $0xa4] sm:$0xf]
      %v655 = vld [vmem:[%s3 + $0xa8] sm:$0xf]
      %v656 = vld [vmem:[%s3 + $0xac] sm:$0xf]
      %v657 = vld [vmem:[%s3 + $0xb0] sm:$0xf]
      %v658 = vld [vmem:[%s3 + $0xb4] sm:$0xf]
      %v659 = vld [vmem:[%s3 + $0xb8] sm:$0xf]
      %v660 = vld [vmem:[%s3 + $0xbc] sm:$0xf]
      %v661 = vld [vmem:[%s6] sm:$0x1]
      %v663 = vlaneseq
      %v664 = vshrl.u32 %v663, 7
      %v665 = vsub.s32 0, %v664
      %v666 = vrot.slane %v661, %v665
      %v716 = vunpack.c.l.b16 %v613
      %v717 = vunpack.c.l.b16 %v614
      %v718 = vunpack.c.l.b16 %v615
      %v719 = vunpack.c.l.b16 %v616
      %v720 = vunpack.c.l.b16 %v617
      %v721 = vunpack.c.l.b16 %v618
      %v722 = vunpack.c.l.b16 %v619
      %v723 = vunpack.c.l.b16 %v620
      %v724 = vunpack.c.l.b16 %v621
      %v725 = vunpack.c.l.b16 %v622
      %v726 = vunpack.c.l.b16 %v623
      %v727 = vunpack.c.l.b16 %v624
      %v728 = vunpack.c.l.b16 %v625
      %v729 = vunpack.c.l.b16 %v626
      %v730 = vunpack.c.l.b16 %v627
      %v731 = vunpack.c.l.b16 %v628
      %v732 = vunpack.c.l.b16 %v629
      %v733 = vunpack.c.l.b16 %v630
      %v734 = vunpack.c.l.b16 %v631
      %v735 = vunpack.c.l.b16 %v632
      %v736 = vunpack.c.l.b16 %v633
      %v737 = vunpack.c.l.b16 %v634
      %v738 = vunpack.c.l.b16 %v635
      %v739 = vunpack.c.l.b16 %v636
      %v740 = vunpack.c.l.b16 %v637
      %v741 = vunpack.c.l.b16 %v638
      %v742 = vunpack.c.l.b16 %v639
      %v743 = vunpack.c.l.b16 %v640
      %v744 = vunpack.c.l.b16 %v641
      %v745 = vunpack.c.l.b16 %v642
      %v746 = vunpack.c.l.b16 %v643
      %v747 = vunpack.c.l.b16 %v644
      %v748 = vunpack.c.l.b16 %v645
      %v749 = vunpack.c.l.b16 %v646
      %v750 = vunpack.c.l.b16 %v647
      %v751 = vunpack.c.l.b16 %v648
      %v752 = vunpack.c.l.b16 %v649
      %v753 = vunpack.c.l.b16 %v650
      %v754 = vunpack.c.l.b16 %v651
      %v755 = vunpack.c.l.b16 %v652
      %v756 = vunpack.c.l.b16 %v653
      %v757 = vunpack.c.l.b16 %v654
      %v758 = vunpack.c.l.b16 %v655
      %v759 = vunpack.c.l.b16 %v656
      %v760 = vunpack.c.l.b16 %v657
      %v761 = vunpack.c.l.b16 %v658
      %v762 = vunpack.c.l.b16 %v659
      %v763 = vunpack.c.l.b16 %v660
      %v764 = vpack.c.b16 %v717, %v716
      %v765 = vpack.c.b16 %v719, %v718
      %v766 = vpack.c.b16 %v721, %v720
      %v767 = vpack.c.b16 %v723, %v722
      %v768 = vpack.c.b16 %v725, %v724
      %v769 = vpack.c.b16 %v727, %v726
      %v770 = vpack.c.b16 %v729, %v728
      %v771 = vpack.c.b16 %v731, %v730
      %v772 = vpack.c.b16 %v733, %v732
      %v773 = vpack.c.b16 %v735, %v734
      %v774 = vpack.c.b16 %v737, %v736
      %v775 = vpack.c.b16 %v739, %v738
      %v776 = vpack.c.b16 %v741, %v740
      %v777 = vpack.c.b16 %v743, %v742
      %v778 = vpack.c.b16 %v745, %v744
      %v779 = vpack.c.b16 %v747, %v746
      %v780 = vpack.c.b16 %v749, %v748
      %v781 = vpack.c.b16 %v751, %v750
      %v782 = vpack.c.b16 %v753, %v752
      %v783 = vpack.c.b16 %v755, %v754
      %v784 = vpack.c.b16 %v757, %v756
      %v785 = vpack.c.b16 %v759, %v758
      %v786 = vpack.c.b16 %v761, %v760
      %v787 = vpack.c.b16 %v763, %v762
      %812 = vmatprep.subr.bf16.mxu0 0
      %813 = vmatpush1.bf16.msra.mxu0 %v764
      %814 = vmatprep.subr.bf16.mxu0 0
      %815 = vmatpush1.bf16.msra.mxu0 %v765
      %816 = vmatprep.subr.bf16.mxu0 0
      %817 = vmatpush1.bf16.msra.mxu0 %v766
      %818 = vmatprep.subr.bf16.mxu0 0
      %819 = vmatpush1.bf16.msra.mxu0 %v767
      %820 = vmatprep.subr.bf16.mxu0 0
      %821 = vmatpush1.bf16.msra.mxu0 %v768
      %822 = vmatprep.subr.bf16.mxu0 0
      %823 = vmatpush1.bf16.msra.mxu0 %v769
      %824 = vmatprep.subr.bf16.mxu0 0
      %825 = vmatpush1.bf16.msra.mxu0 %v770
      %826 = vmatprep.subr.bf16.mxu0 0
      %827 = vmatpush1.bf16.msra.mxu0 %v771
      %828 = vmatprep.subr.bf16.mxu0 0
      %829 = vmatpush1.bf16.msra.mxu0 %v772
      %830 = vmatprep.subr.bf16.mxu0 0
      %831 = vmatpush1.bf16.msra.mxu0 %v773
      %832 = vmatprep.subr.bf16.mxu0 0
      %833 = vmatpush1.bf16.msra.mxu0 %v774
      %834 = vmatprep.subr.bf16.mxu0 0
      %835 = vmatpush1.bf16.msra.mxu0 %v775
      %836 = vmatprep.subr.bf16.mxu0 0
      %837 = vmatpush1.bf16.msra.mxu0 %v776
      %838 = vmatprep.subr.bf16.mxu0 0
      %839 = vmatpush1.bf16.msra.mxu0 %v777
      %840 = vmatprep.subr.bf16.mxu0 0
      %841 = vmatpush1.bf16.msra.mxu0 %v778
      %842 = vmatprep.subr.bf16.mxu0 0
      %843 = vmatpush1.bf16.msra.mxu0 %v779
      %844 = vmatprep.mubr.bf16.mxu0 %v608
      %845 = vmatmul.mubr.bf16.gmra.mrb[0].mxu0 %v607
      %v846 = vpop.f32.mrb[0].mxu0
      %v847 = vadd.f32 %v666, %v846
      %v848 = vpop.f32.mrb[0].mxu0
      %v849 = vpop.f32.mrb[0].mxu0
      %v850 = vadd.f32 %v666, %v849
      %v851 = vpop.f32.mrb[0].mxu0
      %852 = vmatprep.mubr.bf16.mxu0 %v611
      %853 = vmatmul.mubr.bf16.gmra.mrb[0].mxu0 %v610
      %v854 = vpop.f32.mrb[0].mxu0
      %v855 = vadd.f32 %v666, %v854
      %v856 = vpop.f32.mrb[0].mxu0
      %v857 = vpop.f32.mrb[0].mxu0
      %v858 = vadd.f32 %v666, %v857
      %v859 = vpop.f32.mrb[0].mxu0
      %860 = vdwg.mxu0
      %861 = vmatprep.subr.bf16.mxu0 0
      %862 = vmatpush1.bf16.msra.mxu0 %v780
      %863 = vmatprep.subr.bf16.mxu0 0
      %864 = vmatpush1.bf16.msra.mxu0 %v781
      %865 = vmatprep.subr.bf16.mxu0 0
      %866 = vmatpush1.bf16.msra.mxu0 %v782
      %867 = vmatprep.subr.bf16.mxu0 0
      %868 = vmatpush1.bf16.msra.mxu0 %v783
      %869 = vmatprep.subr.bf16.mxu0 0
      %870 = vmatpush1.bf16.msra.mxu0 %v784
      %871 = vmatprep.subr.bf16.mxu0 0
      %872 = vmatpush1.bf16.msra.mxu0 %v785
      %873 = vmatprep.subr.bf16.mxu0 0
      %874 = vmatpush1.bf16.msra.mxu0 %v786
      %875 = vmatprep.subr.bf16.mxu0 0
      %876 = vmatpush1.bf16.msra.mxu0 %v787
      %877 = vmatprep.subr.bf16.mxu0 0
      %878 = vmatpush1.bf16.msra.mxu0 0
      %879 = vmatprep.subr.bf16.mxu0 0
      %880 = vmatpush1.bf16.msra.mxu0 0
      %881 = vmatprep.subr.bf16.mxu0 0
      %882 = vmatpush1.bf16.msra.mxu0 0
      %883 = vmatprep.subr.bf16.mxu0 0
      %884 = vmatpush1.bf16.msra.mxu0 0
      %885 = vmatprep.subr.bf16.mxu0 0
      %886 = vmatpush1.bf16.msra.mxu0 0
      %887 = vmatprep.subr.bf16.mxu0 0
      %888 = vmatpush1.bf16.msra.mxu0 0
      %889 = vmatprep.subr.bf16.mxu0 0
      %890 = vmatpush1.bf16.msra.mxu0 0
      %891 = vmatprep.subr.bf16.mxu0 0
      %892 = vmatpush1.bf16.msra.mxu0 0
      %893 = vmatprep.mubr.bf16.mxu0 0
      %894 = vmatmul.mubr.bf16.gmra.mrb[0].mxu0 %v609
      %v895 = vpop.f32.mrb[0].mxu0
      %v896 = vadd.f32 %v847, %v895
      %v897 = vpop.f32.mrb[0].mxu0
      %v898 = vpop.f32.mrb[0].mxu0
      %v899 = vadd.f32 %v850, %v898
      %v900 = vpop.f32.mrb[0].mxu0
      %901 = vmatprep.mubr.bf16.mxu0 0
      %902 = vmatmul.mubr.bf16.gmra.mrb[0].mxu0 %v612
      %v903 = vpop.f32.mrb[0].mxu0
      %v904 = vadd.f32 %v855, %v903
      %v905 = vpop.f32.mrb[0].mxu0
      %v906 = vpop.f32.mrb[0].mxu0
      %v907 = vadd.f32 %v858, %v906
      %v908 = vpop.f32.mrb[0].mxu0
      %909 = vdwg.mxu0
      %v910 = vld [vmem:[%s326] sm:$0xf]
      %v911 = vld [vmem:[%s326 + $0x4] sm:$0xf]
      %v912 = vld [vmem:[%s326 + $0x8] sm:$0xf]
      %v913 = vld [vmem:[%s326 + $0xc] sm:$0xf]
      %v914 = vld [vmem:[%s4] sm:$0xf]
      %v915 = vld [vmem:[%s4 + $0x4] sm:$0xf]
      %v916 = vld [vmem:[%s4 + $0x8] sm:$0xf]
      %v917 = vld [vmem:[%s4 + $0xc] sm:$0xf]
      %v918 = vld [vmem:[%s4 + $0x10] sm:$0xf]
      %v919 = vld [vmem:[%s4 + $0x14] sm:$0xf]
      %v920 = vld [vmem:[%s4 + $0x18] sm:$0xf]
      %v921 = vld [vmem:[%s4 + $0x1c] sm:$0xf]
      %v922 = vld [vmem:[%s7] sm:$0x1]
      %v924 = vlaneseq
      %v925 = vshrl.u32 %v924, 7
      %v926 = vsub.s32 0, %v925
      %v927 = vrot.slane %v922, %v926
      %v933 = vunpack.c.l.b16 %v910
      %v934 = vunpack.c.l.b16 %v911
      %v935 = vunpack.c.l.b16 %v912
      %v936 = vunpack.c.l.b16 %v913
      %v937 = vpack.c.b16 %v934, %v933
      %v938 = vpack.c.b16 %v936, %v935
      %v947 = vunpack.c.l.b16 %v914
      %v948 = vunpack.c.l.b16 %v915
      %v949 = vunpack.c.l.b16 %v916
      %v950 = vunpack.c.l.b16 %v917
      %v951 = vunpack.c.l.b16 %v918
      %v952 = vunpack.c.l.b16 %v919
      %v953 = vunpack.c.l.b16 %v920
      %v954 = vunpack.c.l.b16 %v921
      %v955 = vpack.c.b16 %v948, %v947
      %v956 = vpack.c.b16 %v950, %v949
      %v957 = vpack.c.b16 %v952, %v951
      %v958 = vpack.c.b16 %v954, %v953
      %v964 = vsel %vm460, %v937, 0
      %v967 = vsel %vm460, %v938, 0
      %969 = vmatprep.subr.bf16.mxu0 0
      %970 = vmatpush1.bf16.msra.mxu0 %v955
      %971 = vmatprep.subr.bf16.mxu0 0
      %972 = vmatpush1.bf16.msra.mxu0 %v956
      %973 = vmatprep.subr.bf16.mxu0 0
      %974 = vmatpush1.bf16.msra.mxu0 %v957
      %975 = vmatprep.subr.bf16.mxu0 0
      %976 = vmatpush1.bf16.msra.mxu0 %v958
      %977 = vmatprep.subr.bf16.mxu0 0
      %978 = vmatpush1.bf16.msra.mxu0 0
      %979 = vmatprep.subr.bf16.mxu0 0
      %980 = vmatpush1.bf16.msra.mxu0 0
      %981 = vmatprep.subr.bf16.mxu0 0
      %982 = vmatpush1.bf16.msra.mxu0 0
      %983 = vmatprep.subr.bf16.mxu0 0
      %984 = vmatpush1.bf16.msra.mxu0 0
      %985 = vmatprep.subr.bf16.mxu0 0
      %986 = vmatpush1.bf16.msra.mxu0 0
      %987 = vmatprep.subr.bf16.mxu0 0
      %988 = vmatpush1.bf16.msra.mxu0 0
      %989 = vmatprep.subr.bf16.mxu0 0
      %990 = vmatpush1.bf16.msra.mxu0 0
      %991 = vmatprep.subr.bf16.mxu0 0
      %992 = vmatpush1.bf16.msra.mxu0 0
      %993 = vmatprep.subr.bf16.mxu0 0
      %994 = vmatpush1.bf16.msra.mxu0 0
      %995 = vmatprep.subr.bf16.mxu0 0
      %996 = vmatpush1.bf16.msra.mxu0 0
      %997 = vmatprep.subr.bf16.mxu0 0
      %998 = vmatpush1.bf16.msra.mxu0 0
      %999 = vmatprep.subr.bf16.mxu0 0
      %1000 = vmatpush1.bf16.msra.mxu0 0
      %1001 = vmatprep.mubr.bf16.mxu0 0
      %1002 = vmatmul.mubr.bf16.gmra.mrb[0].mxu0 %v964
      %v1003 = vpop.f32.mrb[0].mxu0
      %v1004 = vadd.f32 %v927, %v1003
      %v1005 = vpop.f32.mrb[0].mxu0
      %v1006 = vpop.f32.mrb[0].mxu0
      %v1007 = vadd.f32 %v927, %v1006
      %v1008 = vpop.f32.mrb[0].mxu0
      %1009 = vmatprep.mubr.bf16.mxu0 0
      %1010 = vmatmul.mubr.bf16.gmra.mrb[0].mxu0 %v967
      %v1011 = vpop.f32.mrb[0].mxu0
      %v1012 = vadd.f32 %v927, %v1011
      %v1013 = vpop.f32.mrb[0].mxu0
      %v1014 = vpop.f32.mrb[0].mxu0
      %v1015 = vadd.f32 %v927, %v1014
      %v1016 = vpop.f32.mrb[0].mxu0
      %1017 = vdwg.mxu0
      %v1018 = vadd.f32 %v896, %v1004
      %v1019 = vadd.f32 %v899, %v1007
      %v1020 = vadd.f32 %v904, %v1012
      %v1021 = vadd.f32 %v907, %v1015
      %v1022 = vmax.f32 %v1018, 0.0
      %v1023 = vmax.f32 %v1019, 0.0
      %v1024 = vmax.f32 %v1020, 0.0
      %v1025 = vmax.f32 %v1021, 0.0
      %1026 = vst [vmem:[%s332] sm:$0xff] %v1022
      %1027 = vst [vmem:[%s332 + $0x8] sm:$0xff] %v1023
      %1028 = vst [vmem:[%s332 + $0x10] sm:$0xff] %v1024
      %1029 = vst [vmem:[%s332 + $0x18] sm:$0xff] %v1025
      %s1030 = smul.u32 4, %s19
      %p1031 = scmp.lt.s32.totalorder %s1030, 7
      %s1032 = scalar_select %p1031, %s1030, 7
      %s1033 = smul.addr %s1032, 8
      %s1034 = scalar_lea.vmem %s8, %s1033
      // Predicated region
      $region53: #{residual_block_forward.1} parent=51 // pred_check
        %p1035 = pneg %p215
      $region54: #{residual_block_forward.1} parent=51 // pred_check_branch
        %1037 = sbr.rel (%p1035) target = $region56
      $region55: #{residual_block_forward.1} parent=51 // pred_region
        %s1038 = smul.u32 4, %s19
      $region56: #{residual_block_forward.1} parent=51 // pred_fallthru
        _
    $region52: #{residual_block_forward.1} parent=5 // pred_fallthru
      _
    %p1039 = scmp.le.s32.totalorder 2, %s14
    // Predicated region
    $region57: #{residual_block_forward.1} parent=5 // pred_check
      %p1040 = pneg %p1039
    $region58: #{residual_block_forward.1} parent=5 // pred_check_branch
      %1042 = sbr.rel (%p1040) target = $region60
    $region59: #{residual_block_forward.1} parent=5 // pred_region
      %s1043 = ssub.s32 %s14, 2
      // Predicated region
      $region61: #{residual_block_forward.1} parent=59 // pred_check
        %p1044 = pneg %p221
      $region62: #{residual_block_forward.1} parent=59 // pred_check_branch
        %1046 = sbr.rel (%p1044) target = $region64
      $region63: #{residual_block_forward.1} parent=59 // pred_region
        %s1047 = smul.u32 4, %s20
        %p1048 = scmp.lt.s32.totalorder %s1047, 7
        %s1049 = scalar_select %p1048, %s1047, 7
        %s1050 = smul.addr %s1049, 8
        %s1051 = scalar_lea.vmem %s8, %s1050
      $region64: #{residual_block_forward.1} parent=59 // pred_fallthru
        _
    $region60: #{residual_block_forward.1} parent=5 // pred_fallthru
      _
  $region6: #{residual_block_forward.1} parent=0 // loop_footer
    %s18 = sadd.s32 1, %s14
  $region7: #{residual_block_forward.1} parent=0 // loop_footer_branch
    %13 = sbr.rel target = $region3
  $region8: #{residual_block_forward.1} parent=0 // loop_exit
    _

</llo_original>
